<compile_context>
chip_gen: v7x
topology: tpu7x:2x2x1
jax: 0.10.0
libtpu: 0.0.40
codegen_flags: <defaults>
</compile_context>

<pallas_src>
import functools
import math

import jax
import jax.numpy as jnp
from jax.experimental import pallas as pl
from jax.experimental.pallas import tpu as pltpu

_LANES = 128
_SUBLANES = 8
_MAX_TF_COLS = 64            # <= 64 lane-columns per block (bounds unrolled folds)
_MAX_TN = 64                 # rows per block cap (register pressure)
_VMEM_INPUT_BUDGET = 18 * 1024 * 1024   # triple-buffered input blocks, all streams


def _dice_body(x_ref, t_ref, w_ref, o_ref, i_acc, p_acc, t_acc, *, f, tf, k_steps):
    """Shared body. w_ref may be None (no-weight variant)."""
    k = pl.program_id(1)
    nseg = tf // _LANES
    tn = x_ref.shape[0]

    @pl.when(k == 0)
    def _():
        i_acc[...] = jnp.zeros_like(i_acc)
        p_acc[...] = jnp.zeros_like(p_acc)
        t_acc[...] = jnp.zeros_like(t_acc)

    has_tail = (k_steps * tf) > f
    if has_tail:
        lane = jax.lax.broadcasted_iota(jnp.int32, (1, _LANES), 1)

    # Fold every 128-lane column segment into (TN, 128) register partial sums
    # (pure VALU adds); the cross-lane reduce is deferred to the finalize.
    i_s = jnp.zeros((tn, _LANES), jnp.float32)
    p_s = jnp.zeros((tn, _LANES), jnp.float32)
    t_s = jnp.zeros((tn, _LANES), jnp.float32)

    for j in range(nseg):
        sl = slice(j * _LANES, (j + 1) * _LANES)
        p = jax.nn.sigmoid(x_ref[:, sl].astype(jnp.float32))
        t = t_ref[:, sl].astype(jnp.float32)
        if w_ref is not None:
            w = w_ref[:, sl].astype(jnp.float32)
            p = p * w
            t = t * w
        # Static per-segment check: can this segment ever hold columns >= F?
        # (Only possible inside the last k block; the compare below is
        # all-true and harmless for earlier k blocks.)
        if has_tail and (k_steps - 1) * tf + (j + 1) * _LANES > f:
            valid = (k * tf + j * _LANES + lane) < f
            p = jnp.where(valid, p, 0.0)
            t = jnp.where(valid, t, 0.0)
        i_s += p * t
        p_s += p
        t_s += t

    i_acc[...] += i_s
    p_acc[...] += p_s
    t_acc[...] += t_s

    @pl.when(k == k_steps - 1)
    def _():
        inter = jnp.sum(i_acc[...], axis=1, keepdims=True)     # (TN, 1)
        psum = jnp.sum(p_acc[...], axis=1, keepdims=True)
        tsum = jnp.sum(t_acc[...], axis=1, keepdims=True)
        score = 2.0 * (inter + 1.0) / (psum + tsum + 1.0)       # (TN, 1)
        # Lane-dense store; column 0 is read by the wrapper.
        o_ref[...] = jnp.broadcast_to(score, o_ref.shape).astype(o_ref.dtype)


def _dice_kernel(x_ref, t_ref, o_ref, i_acc, p_acc, t_acc, *, f, tf, k_steps):
    _dice_body(x_ref, t_ref, None, o_ref, i_acc, p_acc, t_acc,
               f=f, tf=tf, k_steps=k_steps)


def _dice_kernel_weighted(x_ref, t_ref, w_ref, o_ref, i_acc, p_acc, t_acc,
                          *, f, tf, k_steps):
    # Matches the PyTorch reference exactly: both preds and trues are scaled
    # by w, so the intersection is effectively weighted by w^2.
    _dice_body(x_ref, t_ref, w_ref, o_ref, i_acc, p_acc, t_acc,
               f=f, tf=tf, k_steps=k_steps)


def _tile_plan(n, f, itemsizes):
    """Choose (rows-per-block, lanes-per-block, k_steps)."""
    bytes_per_elem = sum(itemsizes)
    # Sublane rounding: 8 for 32-bit streams, 16 for 16-bit, 32 for 8-bit.
    sub = _SUBLANES * (4 // max(1, min(itemsizes)))
    sub = min(sub, 32)

    f_cols = pl.cdiv(f, _LANES)
    k_steps = pl.cdiv(f_cols, _MAX_TF_COLS)
    tf = pl.cdiv(f_cols, k_steps) * _LANES      # balanced k blocks, mult. of 128
    k_steps = pl.cdiv(f, tf)

    # Rows per block: fill the (triple-buffered, all-streams) VMEM budget.
    tn = _VMEM_INPUT_BUDGET // (3 * tf * bytes_per_elem)
    tn = max(sub, (tn // sub) * sub)
    tn = min(tn, max(_MAX_TN, sub), ((n + sub - 1) // sub) * sub)
    if n > sub and pl.cdiv(n, tn) < 2:
        # Keep >= 2 "parallel" row blocks so both v7x TensorCores have work.
        tn = max(sub, ((pl.cdiv(n, 2) + sub - 1) // sub) * sub)
    return tn, tf, k_steps


@functools.partial(jax.jit, static_argnames=("size_average",))
def dice_loss_pallas(logits, target, weight=None, size_average=True):
    n = logits.shape[0]
    f = math.prod(logits.shape[1:])
    has_w = weight is not None

    # Flatten only (free for contiguous layouts) -- no padding pass.
    x2 = logits.reshape(n, f)
    t2 = target.reshape(n, f)
    operands = [x2, t2]
    if has_w:
        operands.append(weight.reshape(n, f))

    itemsizes = [jnp.dtype(a.dtype).itemsize for a in operands]
    tn, tf, k_steps = _tile_plan(n, f, itemsizes)
    row_blocks = pl.cdiv(n, tn)
    grid = (row_blocks, k_steps)

    # Triple-buffer the input streams when the grid is deep enough to benefit.
    if row_blocks * k_steps >= 3:
        def make_in_spec():
            return pl.BlockSpec((tn, tf), lambda i, k: (i, k),
                                pipeline_mode=pl.Buffered(3))
    else:
        def make_in_spec():
            return pl.BlockSpec((tn, tf), lambda i, k: (i, k))

    in_specs = [make_in_spec() for _ in operands]
    out_spec = pl.BlockSpec((tn, _LANES), lambda i, k: (i, 0))

    kernel_fn = _dice_kernel_weighted if has_w else _dice_kernel
    kernel = functools.partial(kernel_fn, f=f, tf=tf, k_steps=k_steps)

    out = pl.pallas_call(
        kernel,
        out_shape=jax.ShapeDtypeStruct((n, _LANES), jnp.float32),
        grid_spec=pltpu.PrefetchScalarGridSpec(
            num_scalar_prefetch=0,
            grid=grid,
            in_specs=in_specs,
            out_specs=out_spec,
            scratch_shapes=[
                pltpu.VMEM((tn, _LANES), jnp.float32),  # intersection partials
                pltpu.VMEM((tn, _LANES), jnp.float32),  # preds-sum partials
                pltpu.VMEM((tn, _LANES), jnp.float32),  # trues-sum partials
            ],
        ),
        compiler_params=pltpu.CompilerParams(
            dimension_semantics=("parallel", "arbitrary"),
            vmem_limit_bytes=32 * 1024 * 1024,
        ),
    )(*operands)

    scores = out[:, 0]
    if size_average:
        # Tiny N-element mean + clamp stays in XLA.
        return 1.0 - jnp.clip(jnp.sum(scores) / n, 0.0, 1.0)
    return 1.0 - scores


def _dice_loss_ref(logits, target, weight=None, size_average=True):
    """Pure-JAX reference mirroring the PyTorch module."""
    n = logits.shape[0]
    p = jax.nn.sigmoid(logits).reshape(n, -1)
    t = target.reshape(n, -1)
    if weight is not None:
        w = weight.reshape(n, -1)
        p = p * w
        t = t * w
    inter = jnp.sum(p * t, axis=1)
    scores = 2.0 * (inter + 1.0) / (jnp.sum(p, axis=1) + jnp.sum(t, axis=1) + 1.0)
    if size_average:
        return 1.0 - jnp.clip(jnp.sum(scores) / n, 0.0, 1.0)
    return 1.0 - scores


if __name__ == "__main__":
    key = jax.random.PRNGKey(0)
    k1, k2, k3 = jax.random.split(key, 3)

    # Case 1: no weight, F = 4*16*16 = 1024 (lane-aligned, single grid step).
    N, C, H, W = 2, 4, 16, 16
    logits = jax.random.normal(k1, (N, C, H, W), dtype=jnp.float32)
    target = (jax.random.uniform(k2, (N, C, H, W)) > 0.5).astype(jnp.float32)

    out = jax.block_until_ready(dice_loss_pallas(logits, target, size_average=True))
    ref = _dice_loss_ref(logits, target, size_average=True)
    assert jnp.allclose(out, ref, atol=1e-5, rtol=1e-5), (out, ref)

    out_vec = jax.block_until_ready(dice_loss_pallas(logits, target, size_average=False))
    ref_vec = _dice_loss_ref(logits, target, size_average=False)
    assert jnp.allclose(out_vec, ref_vec, atol=1e-5, rtol=1e-5), (out_vec, ref_vec)

    # Case 2: weighted + F = 4*10*10 = 400 (ragged lane tail -> in-kernel mask).
    N2, C2, H2, W2 = 2, 4, 10, 10
    logits2 = jax.random.normal(k1, (N2, C2, H2, W2), dtype=jnp.float32)
    target2 = (jax.random.uniform(k2, (N2, C2, H2, W2)) > 0.5).astype(jnp.float32)
    weight2 = jax.random.uniform(k3, (N2, C2, H2, W2), dtype=jnp.float32)

    out_w = jax.block_until_ready(
        dice_loss_pallas(logits2, target2, weight=weight2, size_average=True)
    )
    ref_w = _dice_loss_ref(logits2, target2, weight=weight2, size_average=True)
    assert jnp.allclose(out_w, ref_w, atol=1e-5, rtol=1e-5), (out_w, ref_w)

    # Case 3: larger unweighted case, F = 3*65*67 = 13065 -> 2 k-steps with a
    # masked tail, N=16 -> 2 parallel row blocks, 4-step grid -> Buffered(3).
    N3, C3, H3, W3 = 16, 3, 65, 67
    logits3 = jax.random.normal(k1, (N3, C3, H3, W3), dtype=jnp.float32)
    target3 = (jax.random.uniform(k2, (N3, C3, H3, W3)) > 0.5).astype(jnp.float32)

    out3 = jax.block_until_ready(dice_loss_pallas(logits3, target3, size_average=False))
    ref3 = _dice_loss_ref(logits3, target3, size_average=False)
    assert jnp.allclose(out3, ref3, atol=1e-4, rtol=1e-5), (out3, ref3)

    print("KERNEL_OK")
</pallas_src>

<mosaic_0001>
module attributes {stable_mosaic.version = 11 : i64} {
  func.func @_dice_kernel(%arg0: i32, %arg1: i32, %arg2: memref<8x1024xf32, #tpu.memory_space<vmem>>, %arg3: memref<8x1024xf32, #tpu.memory_space<vmem>>, %arg4: memref<8x128xf32, #tpu.memory_space<vmem>>, %arg5: memref<8x128xf32, #tpu.memory_space<vmem>>, %arg6: memref<8x128xf32, #tpu.memory_space<vmem>>, %arg7: memref<8x128xf32, #tpu.memory_space<vmem>>) attributes {dimension_semantics = [#tpu.dimension_semantics<parallel>, #tpu.dimension_semantics<arbitrary>], iteration_bounds = array<i64: 1, 1>, scalar_prefetch = 0 : i64, scratch_operands = 3 : i64, tpu.core_type = #tpu.core_type<tc>, window_params = [{transform_indices = @transform_0, window_bounds = array<i64: 8, 1024>}, {transform_indices = @transform_1, window_bounds = array<i64: 8, 1024>}, {transform_indices = @transform_2, window_bounds = array<i64: 8, 128>}]} {
    %c0_i32 = arith.constant 0 : i32
    %0 = arith.cmpi eq, %arg1, %c0_i32 : i32
    %1 = arith.extui %0 : i1 to i32
    %c0_i32_0 = arith.constant 0 : i32
    %2 = arith.cmpi ne, %1, %c0_i32_0 : i32
    scf.if %2 {
      %cst_49 = arith.constant 0.000000e+00 : f32
      %106 = vector.broadcast %cst_49 : f32 to vector<8x128xf32>
      %c0_50 = arith.constant 0 : index
      %c0_51 = arith.constant 0 : index
      %107 = vector.load %arg5[%c0_50, %c0_51] : memref<8x128xf32, #tpu.memory_space<vmem>>, vector<8x128xf32>
      tpu.vector_store %arg5[%c0_50, %c0_51], %106 {strides = array<i32>} : memref<8x128xf32, #tpu.memory_space<vmem>>, vector<8x128xf32>,
      %cst_52 = arith.constant 0.000000e+00 : f32
      %108 = vector.broadcast %cst_52 : f32 to vector<8x128xf32>
      %c0_53 = arith.constant 0 : index
      %c0_54 = arith.constant 0 : index
      %109 = vector.load %arg6[%c0_53, %c0_54] : memref<8x128xf32, #tpu.memory_space<vmem>>, vector<8x128xf32>
      tpu.vector_store %arg6[%c0_53, %c0_54], %108 {strides = array<i32>} : memref<8x128xf32, #tpu.memory_space<vmem>>, vector<8x128xf32>,
      %cst_55 = arith.constant 0.000000e+00 : f32
      %110 = vector.broadcast %cst_55 : f32 to vector<8x128xf32>
      %c0_56 = arith.constant 0 : index
      %c0_57 = arith.constant 0 : index
      %111 = vector.load %arg7[%c0_56, %c0_57] : memref<8x128xf32, #tpu.memory_space<vmem>>, vector<8x128xf32>
      tpu.vector_store %arg7[%c0_56, %c0_57], %110 {strides = array<i32>} : memref<8x128xf32, #tpu.memory_space<vmem>>, vector<8x128xf32>,
    } else {
    }
    %cst = arith.constant 0.000000e+00 : f32
    %3 = vector.broadcast %cst : f32 to vector<8x128xf32>
    %cst_1 = arith.constant 0.000000e+00 : f32
    %4 = vector.broadcast %cst_1 : f32 to vector<8x128xf32>
    %cst_2 = arith.constant 0.000000e+00 : f32
    %5 = vector.broadcast %cst_2 : f32 to vector<8x128xf32>
    %c0 = arith.constant 0 : index
    %c0_3 = arith.constant 0 : index
    %6 = vector.load %arg2[%c0, %c0_3] : memref<8x1024xf32, #tpu.memory_space<vmem>>, vector<8x128xf32>
    %7 = arith.negf %6 : vector<8x128xf32>
    %8 = math.exp %7 : vector<8x128xf32>
    %cst_4 = arith.constant 1.000000e+00 : f32
    %9 = vector.broadcast %cst_4 : f32 to vector<8x128xf32>
    %10 = arith.addf %9, %8 : vector<8x128xf32>
    %11 = arith.divf %9, %10 : vector<8x128xf32>
    %c0_5 = arith.constant 0 : index
    %c0_6 = arith.constant 0 : index
    %12 = vector.load %arg3[%c0_5, %c0_6] : memref<8x1024xf32, #tpu.memory_space<vmem>>, vector<8x128xf32>
    %13 = arith.mulf %11, %12 : vector<8x128xf32>
    %14 = arith.addf %3, %13 : vector<8x128xf32>
    %15 = arith.addf %4, %11 : vector<8x128xf32>
    %16 = arith.addf %5, %12 : vector<8x128xf32>
    %c0_7 = arith.constant 0 : index
    %c128 = arith.constant 128 : index
    %17 = vector.load %arg2[%c0_7, %c128] : memref<8x1024xf32, #tpu.memory_space<vmem>>, vector<8x128xf32>
    %18 = arith.negf %17 : vector<8x128xf32>
    %19 = math.exp %18 : vector<8x128xf32>
    %cst_8 = arith.constant 1.000000e+00 : f32
    %20 = vector.broadcast %cst_8 : f32 to vector<8x128xf32>
    %21 = arith.addf %20, %19 : vector<8x128xf32>
    %22 = arith.divf %20, %21 : vector<8x128xf32>
    %c0_9 = arith.constant 0 : index
    %c128_10 = arith.constant 128 : index
    %23 = vector.load %arg3[%c0_9, %c128_10] : memref<8x1024xf32, #tpu.memory_space<vmem>>, vector<8x128xf32>
    %24 = arith.mulf %22, %23 : vector<8x128xf32>
    %25 = arith.addf %14, %24 : vector<8x128xf32>
    %26 = arith.addf %15, %22 : vector<8x128xf32>
    %27 = arith.addf %16, %23 : vector<8x128xf32>
    %c0_11 = arith.constant 0 : index
    %c256 = arith.constant 256 : index
    %28 = vector.load %arg2[%c0_11, %c256] : memref<8x1024xf32, #tpu.memory_space<vmem>>, vector<8x128xf32>
    %29 = arith.negf %28 : vector<8x128xf32>
    %30 = math.exp %29 : vector<8x128xf32>
    %cst_12 = arith.constant 1.000000e+00 : f32
    %31 = vector.broadcast %cst_12 : f32 to vector<8x128xf32>
    %32 = arith.addf %31, %30 : vector<8x128xf32>
    %33 = arith.divf %31, %32 : vector<8x128xf32>
    %c0_13 = arith.constant 0 : index
    %c256_14 = arith.constant 256 : index
    %34 = vector.load %arg3[%c0_13, %c256_14] : memref<8x1024xf32, #tpu.memory_space<vmem>>, vector<8x128xf32>
    %35 = arith.mulf %33, %34 : vector<8x128xf32>
    %36 = arith.addf %25, %35 : vector<8x128xf32>
    %37 = arith.addf %26, %33 : vector<8x128xf32>
    %38 = arith.addf %27, %34 : vector<8x128xf32>
    %c0_15 = arith.constant 0 : index
    %c384 = arith.constant 384 : index
    %39 = vector.load %arg2[%c0_15, %c384] : memref<8x1024xf32, #tpu.memory_space<vmem>>, vector<8x128xf32>
    %40 = arith.negf %39 : vector<8x128xf32>
    %41 = math.exp %40 : vector<8x128xf32>
    %cst_16 = arith.constant 1.000000e+00 : f32
    %42 = vector.broadcast %cst_16 : f32 to vector<8x128xf32>
    %43 = arith.addf %42, %41 : vector<8x128xf32>
    %44 = arith.divf %42, %43 : vector<8x128xf32>
    %c0_17 = arith.constant 0 : index
    %c384_18 = arith.constant 384 : index
    %45 = vector.load %arg3[%c0_17, %c384_18] : memref<8x1024xf32, #tpu.memory_space<vmem>>, vector<8x128xf32>
    %46 = arith.mulf %44, %45 : vector<8x128xf32>
    %47 = arith.addf %36, %46 : vector<8x128xf32>
    %48 = arith.addf %37, %44 : vector<8x128xf32>
    %49 = arith.addf %38, %45 : vector<8x128xf32>
    %c0_19 = arith.constant 0 : index
    %c512 = arith.constant 512 : index
    %50 = vector.load %arg2[%c0_19, %c512] : memref<8x1024xf32, #tpu.memory_space<vmem>>, vector<8x128xf32>
    %51 = arith.negf %50 : vector<8x128xf32>
    %52 = math.exp %51 : vector<8x128xf32>
    %cst_20 = arith.constant 1.000000e+00 : f32
    %53 = vector.broadcast %cst_20 : f32 to vector<8x128xf32>
    %54 = arith.addf %53, %52 : vector<8x128xf32>
    %55 = arith.divf %53, %54 : vector<8x128xf32>
    %c0_21 = arith.constant 0 : index
    %c512_22 = arith.constant 512 : index
    %56 = vector.load %arg3[%c0_21, %c512_22] : memref<8x1024xf32, #tpu.memory_space<vmem>>, vector<8x128xf32>
    %57 = arith.mulf %55, %56 : vector<8x128xf32>
    %58 = arith.addf %47, %57 : vector<8x128xf32>
    %59 = arith.addf %48, %55 : vector<8x128xf32>
    %60 = arith.addf %49, %56 : vector<8x128xf32>
    %c0_23 = arith.constant 0 : index
    %c640 = arith.constant 640 : index
    %61 = vector.load %arg2[%c0_23, %c640] : memref<8x1024xf32, #tpu.memory_space<vmem>>, vector<8x128xf32>
    %62 = arith.negf %61 : vector<8x128xf32>
    %63 = math.exp %62 : vector<8x128xf32>
    %cst_24 = arith.constant 1.000000e+00 : f32
    %64 = vector.broadcast %cst_24 : f32 to vector<8x128xf32>
    %65 = arith.addf %64, %63 : vector<8x128xf32>
    %66 = arith.divf %64, %65 : vector<8x128xf32>
    %c0_25 = arith.constant 0 : index
    %c640_26 = arith.constant 640 : index
    %67 = vector.load %arg3[%c0_25, %c640_26] : memref<8x1024xf32, #tpu.memory_space<vmem>>, vector<8x128xf32>
    %68 = arith.mulf %66, %67 : vector<8x128xf32>
    %69 = arith.addf %58, %68 : vector<8x128xf32>
    %70 = arith.addf %59, %66 : vector<8x128xf32>
    %71 = arith.addf %60, %67 : vector<8x128xf32>
    %c0_27 = arith.constant 0 : index
    %c768 = arith.constant 768 : index
    %72 = vector.load %arg2[%c0_27, %c768] : memref<8x1024xf32, #tpu.memory_space<vmem>>, vector<8x128xf32>
    %73 = arith.negf %72 : vector<8x128xf32>
    %74 = math.exp %73 : vector<8x128xf32>
    %cst_28 = arith.constant 1.000000e+00 : f32
    %75 = vector.broadcast %cst_28 : f32 to vector<8x128xf32>
    %76 = arith.addf %75, %74 : vector<8x128xf32>
    %77 = arith.divf %75, %76 : vector<8x128xf32>
    %c0_29 = arith.constant 0 : index
    %c768_30 = arith.constant 768 : index
    %78 = vector.load %arg3[%c0_29, %c768_30] : memref<8x1024xf32, #tpu.memory_space<vmem>>, vector<8x128xf32>
    %79 = arith.mulf %77, %78 : vector<8x128xf32>
    %80 = arith.addf %69, %79 : vector<8x128xf32>
    %81 = arith.addf %70, %77 : vector<8x128xf32>
    %82 = arith.addf %71, %78 : vector<8x128xf32>
    %c0_31 = arith.constant 0 : index
    %c896 = arith.constant 896 : index
    %83 = vector.load %arg2[%c0_31, %c896] : memref<8x1024xf32, #tpu.memory_space<vmem>>, vector<8x128xf32>
    %84 = arith.negf %83 : vector<8x128xf32>
    %85 = math.exp %84 : vector<8x128xf32>
    %cst_32 = arith.constant 1.000000e+00 : f32
    %86 = vector.broadcast %cst_32 : f32 to vector<8x128xf32>
    %87 = arith.addf %86, %85 : vector<8x128xf32>
    %88 = arith.divf %86, %87 : vector<8x128xf32>
    %c0_33 = arith.constant 0 : index
    %c896_34 = arith.constant 896 : index
    %89 = vector.load %arg3[%c0_33, %c896_34] : memref<8x1024xf32, #tpu.memory_space<vmem>>, vector<8x128xf32>
    %90 = arith.mulf %88, %89 : vector<8x128xf32>
    %91 = arith.addf %80, %90 : vector<8x128xf32>
    %92 = arith.addf %81, %88 : vector<8x128xf32>
    %93 = arith.addf %82, %89 : vector<8x128xf32>
    %c0_35 = arith.constant 0 : index
    %c0_36 = arith.constant 0 : index
    %94 = vector.load %arg5[%c0_35, %c0_36] : memref<8x128xf32, #tpu.memory_space<vmem>>, vector<8x128xf32>
    %95 = arith.addf %94, %91 : vector<8x128xf32>
    %c0_37 = arith.constant 0 : index
    %c0_38 = arith.constant 0 : index
    %96 = vector.load %arg5[%c0_37, %c0_38] : memref<8x128xf32, #tpu.memory_space<vmem>>, vector<8x128xf32>
    tpu.vector_store %arg5[%c0_37, %c0_38], %95 {strides = array<i32>} : memref<8x128xf32, #tpu.memory_space<vmem>>, vector<8x128xf32>,
    %c0_39 = arith.constant 0 : index
    %c0_40 = arith.constant 0 : index
    %97 = vector.load %arg6[%c0_39, %c0_40] : memref<8x128xf32, #tpu.memory_space<vmem>>, vector<8x128xf32>
    %98 = arith.addf %97, %92 : vector<8x128xf32>
    %c0_41 = arith.constant 0 : index
    %c0_42 = arith.constant 0 : index
    %99 = vector.load %arg6[%c0_41, %c0_42] : memref<8x128xf32, #tpu.memory_space<vmem>>, vector<8x128xf32>
    tpu.vector_store %arg6[%c0_41, %c0_42], %98 {strides = array<i32>} : memref<8x128xf32, #tpu.memory_space<vmem>>, vector<8x128xf32>,
    %c0_43 = arith.constant 0 : index
    %c0_44 = arith.constant 0 : index
    %100 = vector.load %arg7[%c0_43, %c0_44] : memref<8x128xf32, #tpu.memory_space<vmem>>, vector<8x128xf32>
    %101 = arith.addf %100, %93 : vector<8x128xf32>
    %c0_45 = arith.constant 0 : index
    %c0_46 = arith.constant 0 : index
    %102 = vector.load %arg7[%c0_45, %c0_46] : memref<8x128xf32, #tpu.memory_space<vmem>>, vector<8x128xf32>
    tpu.vector_store %arg7[%c0_45, %c0_46], %101 {strides = array<i32>} : memref<8x128xf32, #tpu.memory_space<vmem>>, vector<8x128xf32>,
    %c0_i32_47 = arith.constant 0 : i32
    %103 = arith.cmpi eq, %arg1, %c0_i32_47 : i32
    %104 = arith.extui %103 : i1 to i32
    %c0_i32_48 = arith.constant 0 : i32
    %105 = arith.cmpi ne, %104, %c0_i32_48 : i32
    scf.if %105 {
      %c0_49 = arith.constant 0 : index
      %c0_50 = arith.constant 0 : index
      %106 = vector.load %arg5[%c0_49, %c0_50] : memref<8x128xf32, #tpu.memory_space<vmem>>, vector<8x128xf32>
      %cst_51 = arith.constant dense<0.000000e+00> : vector<8xf32>
      %107 = vector.multi_reduction <add>, %106, %cst_51 [1] : vector<8x128xf32> to vector<8xf32>
      %108 = vector.shape_cast %107 : vector<8xf32> to vector<8x1xf32>
      %c0_52 = arith.constant 0 : index
      %c0_53 = arith.constant 0 : index
      %109 = vector.load %arg6[%c0_52, %c0_53] : memref<8x128xf32, #tpu.memory_space<vmem>>, vector<8x128xf32>
      %cst_54 = arith.constant dense<0.000000e+00> : vector<8xf32>
      %110 = vector.multi_reduction <add>, %109, %cst_54 [1] : vector<8x128xf32> to vector<8xf32>
      %111 = vector.shape_cast %110 : vector<8xf32> to vector<8x1xf32>
      %c0_55 = arith.constant 0 : index
      %c0_56 = arith.constant 0 : index
      %112 = vector.load %arg7[%c0_55, %c0_56] : memref<8x128xf32, #tpu.memory_space<vmem>>, vector<8x128xf32>
      %cst_57 = arith.constant dense<0.000000e+00> : vector<8xf32>
      %113 = vector.multi_reduction <add>, %112, %cst_57 [1] : vector<8x128xf32> to vector<8xf32>
      %114 = vector.shape_cast %113 : vector<8xf32> to vector<8x1xf32>
      %cst_58 = arith.constant 1.000000e+00 : f32
      %115 = vector.broadcast %cst_58 : f32 to vector<8x1xf32>
      %116 = arith.addf %108, %115 : vector<8x1xf32>
      %cst_59 = arith.constant 2.000000e+00 : f32
      %117 = vector.broadcast %cst_59 : f32 to vector<8x1xf32>
      %118 = arith.mulf %117, %116 : vector<8x1xf32>
      %119 = arith.addf %111, %114 : vector<8x1xf32>
      %cst_60 = arith.constant 1.000000e+00 : f32
      %120 = vector.broadcast %cst_60 : f32 to vector<8x1xf32>
      %121 = arith.addf %119, %120 : vector<8x1xf32>
      %122 = arith.divf %118, %121 : vector<8x1xf32>
      %123 = vector.shape_cast %122 : vector<8x1xf32> to vector<8x1xf32>
      %124 = vector.broadcast %123 : vector<8x1xf32> to vector<8x128xf32>
      %c0_61 = arith.constant 0 : index
      %c0_62 = arith.constant 0 : index
      %125 = vector.load %arg4[%c0_61, %c0_62] : memref<8x128xf32, #tpu.memory_space<vmem>>, vector<8x128xf32>
      tpu.vector_store %arg4[%c0_61, %c0_62], %124 {strides = array<i32>} : memref<8x128xf32, #tpu.memory_space<vmem>>, vector<8x128xf32>,
    } else {
    }
    return
  }
  func.func @transform_0(%arg0: i32, %arg1: i32) -> (i32, i32) {
    %c0_i32 = arith.constant 0 : i32
    return %arg0, %arg1 : i32, i32
  }
  func.func @transform_1(%arg0: i32, %arg1: i32) -> (i32, i32) {
    %c0_i32 = arith.constant 0 : i32
    return %arg0, %arg1 : i32, i32
  }
  func.func @transform_2(%arg0: i32, %arg1: i32) -> (i32, i32) {
    %c0_i32 = arith.constant 0 : i32
    %c0_i32_0 = arith.constant 0 : i32
    return %arg0, %c0_i32 : i32, i32
  }
}

</mosaic_0001>

<llo_original>
// kernel: dice_loss_pallas.1
$region0: #{dice_loss_pallas.1}
  #allocation0 [shape = 'u32[]', space=smem, size = 0x4, offset = 0x4, fixed_abs, tag = 'smem constant byte address 0x4 - core index']
  #allocation1 [shape = 'u32[144,128]{1,0:T(1,128)}', space=vmem, size = 0x12000, scoped, tag = 'internal scratch']
  #allocation2 [shape = 'f32[8,128]{1,0:T(8,128)}', space=vmem, size = 0x1000, scoped, tag = 'scratch operand']
  #allocation3 [shape = 'f32[8,128]{1,0:T(8,128)}', space=vmem, size = 0x1000, scoped, tag = 'scratch operand']
  #allocation4 [shape = 'f32[8,128]{1,0:T(8,128)}', space=vmem, size = 0x1000, scoped, tag = 'scratch operand']
  %s0 = inlined_call_operand.vmem [shape: f32[2,1024], index: 0, kind: input, shape index: {}]
  %s1 = inlined_call_operand.vmem [shape: f32[2,1024], index: 1, kind: input, shape index: {}]
  %s2 = inlined_call_operand.vmem [shape: f32[2,128], index: 2, kind: output, shape index: {}]
  %s3 = sld [smem:[#allocation0]]
  $region56: #{dice_loss_pallas.1} parent=0
    _
  %s5 = ssub.s32 1, %s3
  %s6 = scalar_select 0, %s5, %s3
  $region1: #{dice_loss_pallas.1} parent=0
    #allocation5 [shape = 'u8[4096]{0}', space=vmem, size = 0x1000, scoped, tag = 'output window, operand 0, single buffered']
    // Predicated region
    $region2: #{dice_loss_pallas.1} parent=1 // pred_check
      _
    $region3: #{dice_loss_pallas.1} parent=1 // pred_check_branch
      %8 = sbr.rel (0) target = $region5
    $region4: #{dice_loss_pallas.1} parent=1 // pred_region
      _
    $region5: #{dice_loss_pallas.1} parent=1 // pred_fallthru
      _
    // Predicated region
    $region6: #{dice_loss_pallas.1} parent=1 // pred_check
      _
    $region7: #{dice_loss_pallas.1} parent=1 // pred_check_branch
      %10 = sbr.rel (0) target = $region9
    $region8: #{dice_loss_pallas.1} parent=1 // pred_region
      _
    $region9: #{dice_loss_pallas.1} parent=1 // pred_fallthru
      _
    %p11 = scmp.eq.s32.totalorder 0, 0
    // Predicated region
    $region10: #{dice_loss_pallas.1} parent=1 // pred_check
      %p12 = pneg %p11
    $region11: #{dice_loss_pallas.1} parent=1 // pred_check_branch
      %14 = sbr.rel (%p12) target = $region13
    $region12: #{dice_loss_pallas.1} parent=1 // pred_region
      %15 = vst [vmem:[#allocation2] sm:$0xff] 0.0
      %16 = vst [vmem:[#allocation3] sm:$0xff] 0.0
      %17 = vst [vmem:[#allocation4] sm:$0xff] 0.0
    $region13: #{dice_loss_pallas.1} parent=1 // pred_fallthru
      _
    %v18 = vld [vmem:[%s0] sm:$0x3]
    %v19 = vld [vmem:[%s0 + $0x10] sm:$0x3]
    %v20 = vld [vmem:[%s0 + $0x20] sm:$0x3]
    %v21 = vld [vmem:[%s0 + $0x30] sm:$0x3]
    %v22 = vxor.u32 %v18, 2147483648
    %v23 = vxor.u32 %v19, 2147483648
    %v24 = vxor.u32 %v20, 2147483648
    %v25 = vxor.u32 %v21, 2147483648
    %v26 = vmul.f32 %v22, 1.442695
    %v27 = vpow.pop %v26
    %v28 = vmul.f32 %v23, 1.442695
    %v29 = vpow.pop %v28
    %v30 = vmul.f32 %v24, 1.442695
    %v31 = vpow.pop %v30
    %v32 = vmul.f32 %v25, 1.442695
    %v33 = vpow.pop %v32
    %v34 = vadd.f32 %v27, 1.0
    %v35 = vadd.f32 %v29, 1.0
    %v36 = vadd.f32 %v31, 1.0
    %v37 = vadd.f32 %v33, 1.0
    %v38 = vrcp.pop %v34
    %v39 = vmul.f32 1.0, %v38
    %v40 = vrcp.pop %v35
    %v41 = vmul.f32 1.0, %v40
    %v42 = vrcp.pop %v36
    %v43 = vmul.f32 1.0, %v42
    %v44 = vrcp.pop %v37
    %v45 = vmul.f32 1.0, %v44
    %v46 = vld [vmem:[%s1] sm:$0x3]
    %v47 = vld [vmem:[%s1 + $0x10] sm:$0x3]
    %v48 = vld [vmem:[%s1 + $0x20] sm:$0x3]
    %v49 = vld [vmem:[%s1 + $0x30] sm:$0x3]
    %v50 = vmul.f32 %v39, %v46
    %v51 = vmul.f32 %v41, %v47
    %v52 = vmul.f32 %v43, %v48
    %v53 = vmul.f32 %v45, %v49
    %v54 = vadd.f32 %v50, 0.0
    %v55 = vadd.f32 %v51, 0.0
    %v56 = vadd.f32 %v52, 0.0
    %v57 = vadd.f32 %v53, 0.0
    %v58 = vadd.f32 %v39, 0.0
    %v59 = vadd.f32 %v41, 0.0
    %v60 = vadd.f32 %v43, 0.0
    %v61 = vadd.f32 %v45, 0.0
    %v62 = vadd.f32 %v46, 0.0
    %v63 = vadd.f32 %v47, 0.0
    %v64 = vadd.f32 %v48, 0.0
    %v65 = vadd.f32 %v49, 0.0
    %v66 = vld [vmem:[%s0 + $0x2] sm:$0x3]
    %v67 = vld [vmem:[%s0 + $0x12] sm:$0x3]
    %v68 = vld [vmem:[%s0 + $0x22] sm:$0x3]
    %v69 = vld [vmem:[%s0 + $0x32] sm:$0x3]
    %v70 = vxor.u32 %v66, 2147483648
    %v71 = vxor.u32 %v67, 2147483648
    %v72 = vxor.u32 %v68, 2147483648
    %v73 = vxor.u32 %v69, 2147483648
    %v74 = vmul.f32 %v70, 1.442695
    %v75 = vpow.pop %v74
    %v76 = vmul.f32 %v71, 1.442695
    %v77 = vpow.pop %v76
    %v78 = vmul.f32 %v72, 1.442695
    %v79 = vpow.pop %v78
    %v80 = vmul.f32 %v73, 1.442695
    %v81 = vpow.pop %v80
    %v82 = vadd.f32 %v75, 1.0
    %v83 = vadd.f32 %v77, 1.0
    %v84 = vadd.f32 %v79, 1.0
    %v85 = vadd.f32 %v81, 1.0
    %v86 = vrcp.pop %v82
    %v87 = vmul.f32 1.0, %v86
    %v88 = vrcp.pop %v83
    %v89 = vmul.f32 1.0, %v88
    %v90 = vrcp.pop %v84
    %v91 = vmul.f32 1.0, %v90
    %v92 = vrcp.pop %v85
    %v93 = vmul.f32 1.0, %v92
    %v94 = vld [vmem:[%s1 + $0x2] sm:$0x3]
    %v95 = vld [vmem:[%s1 + $0x12] sm:$0x3]
    %v96 = vld [vmem:[%s1 + $0x22] sm:$0x3]
    %v97 = vld [vmem:[%s1 + $0x32] sm:$0x3]
    %v98 = vmul.f32 %v87, %v94
    %v99 = vmul.f32 %v89, %v95
    %v100 = vmul.f32 %v91, %v96
    %v101 = vmul.f32 %v93, %v97
    %v102 = vadd.f32 %v54, %v98
    %v103 = vadd.f32 %v55, %v99
    %v104 = vadd.f32 %v56, %v100
    %v105 = vadd.f32 %v57, %v101
    %v106 = vadd.f32 %v58, %v87
    %v107 = vadd.f32 %v59, %v89
    %v108 = vadd.f32 %v60, %v91
    %v109 = vadd.f32 %v61, %v93
    %v110 = vadd.f32 %v62, %v94
    %v111 = vadd.f32 %v63, %v95
    %v112 = vadd.f32 %v64, %v96
    %v113 = vadd.f32 %v65, %v97
    %v114 = vld [vmem:[%s0 + $0x4] sm:$0x3]
    %v115 = vld [vmem:[%s0 + $0x14] sm:$0x3]
    %v116 = vld [vmem:[%s0 + $0x24] sm:$0x3]
    %v117 = vld [vmem:[%s0 + $0x34] sm:$0x3]
    %v118 = vxor.u32 %v114, 2147483648
    %v119 = vxor.u32 %v115, 2147483648
    %v120 = vxor.u32 %v116, 2147483648
    %v121 = vxor.u32 %v117, 2147483648
    %v122 = vmul.f32 %v118, 1.442695
    %v123 = vpow.pop %v122
    %v124 = vmul.f32 %v119, 1.442695
    %v125 = vpow.pop %v124
    %v126 = vmul.f32 %v120, 1.442695
    %v127 = vpow.pop %v126
    %v128 = vmul.f32 %v121, 1.442695
    %v129 = vpow.pop %v128
    %v130 = vadd.f32 %v123, 1.0
    %v131 = vadd.f32 %v125, 1.0
    %v132 = vadd.f32 %v127, 1.0
    %v133 = vadd.f32 %v129, 1.0
    %v134 = vrcp.pop %v130
    %v135 = vmul.f32 1.0, %v134
    %v136 = vrcp.pop %v131
    %v137 = vmul.f32 1.0, %v136
    %v138 = vrcp.pop %v132
    %v139 = vmul.f32 1.0, %v138
    %v140 = vrcp.pop %v133
    %v141 = vmul.f32 1.0, %v140
    %v142 = vld [vmem:[%s1 + $0x4] sm:$0x3]
    %v143 = vld [vmem:[%s1 + $0x14] sm:$0x3]
    %v144 = vld [vmem:[%s1 + $0x24] sm:$0x3]
    %v145 = vld [vmem:[%s1 + $0x34] sm:$0x3]
    %v146 = vmul.f32 %v135, %v142
    %v147 = vmul.f32 %v137, %v143
    %v148 = vmul.f32 %v139, %v144
    %v149 = vmul.f32 %v141, %v145
    %v150 = vadd.f32 %v102, %v146
    %v151 = vadd.f32 %v103, %v147
    %v152 = vadd.f32 %v104, %v148
    %v153 = vadd.f32 %v105, %v149
    %v154 = vadd.f32 %v106, %v135
    %v155 = vadd.f32 %v107, %v137
    %v156 = vadd.f32 %v108, %v139
    %v157 = vadd.f32 %v109, %v141
    %v158 = vadd.f32 %v110, %v142
    %v159 = vadd.f32 %v111, %v143
    %v160 = vadd.f32 %v112, %v144
    %v161 = vadd.f32 %v113, %v145
    %v162 = vld [vmem:[%s0 + $0x6] sm:$0x3]
    %v163 = vld [vmem:[%s0 + $0x16] sm:$0x3]
    %v164 = vld [vmem:[%s0 + $0x26] sm:$0x3]
    %v165 = vld [vmem:[%s0 + $0x36] sm:$0x3]
    %v166 = vxor.u32 %v162, 2147483648
    %v167 = vxor.u32 %v163, 2147483648
    %v168 = vxor.u32 %v164, 2147483648
    %v169 = vxor.u32 %v165, 2147483648
    %v170 = vmul.f32 %v166, 1.442695
    %v171 = vpow.pop %v170
    %v172 = vmul.f32 %v167, 1.442695
    %v173 = vpow.pop %v172
    %v174 = vmul.f32 %v168, 1.442695
    %v175 = vpow.pop %v174
    %v176 = vmul.f32 %v169, 1.442695
    %v177 = vpow.pop %v176
    %v178 = vadd.f32 %v171, 1.0
    %v179 = vadd.f32 %v173, 1.0
    %v180 = vadd.f32 %v175, 1.0
    %v181 = vadd.f32 %v177, 1.0
    %v182 = vrcp.pop %v178
    %v183 = vmul.f32 1.0, %v182
    %v184 = vrcp.pop %v179
    %v185 = vmul.f32 1.0, %v184
    %v186 = vrcp.pop %v180
    %v187 = vmul.f32 1.0, %v186
    %v188 = vrcp.pop %v181
    %v189 = vmul.f32 1.0, %v188
    %v190 = vld [vmem:[%s1 + $0x6] sm:$0x3]
    %v191 = vld [vmem:[%s1 + $0x16] sm:$0x3]
    %v192 = vld [vmem:[%s1 + $0x26] sm:$0x3]
    %v193 = vld [vmem:[%s1 + $0x36] sm:$0x3]
    %v194 = vmul.f32 %v183, %v190
    %v195 = vmul.f32 %v185, %v191
    %v196 = vmul.f32 %v187, %v192
    %v197 = vmul.f32 %v189, %v193
    %v198 = vadd.f32 %v150, %v194
    %v199 = vadd.f32 %v151, %v195
    %v200 = vadd.f32 %v152, %v196
    %v201 = vadd.f32 %v153, %v197
    %v202 = vadd.f32 %v154, %v183
    %v203 = vadd.f32 %v155, %v185
    %v204 = vadd.f32 %v156, %v187
    %v205 = vadd.f32 %v157, %v189
    %v206 = vadd.f32 %v158, %v190
    %v207 = vadd.f32 %v159, %v191
    %v208 = vadd.f32 %v160, %v192
    %v209 = vadd.f32 %v161, %v193
    %v210 = vld [vmem:[%s0 + $0x8] sm:$0x3]
    %v211 = vld [vmem:[%s0 + $0x18] sm:$0x3]
    %v212 = vld [vmem:[%s0 + $0x28] sm:$0x3]
    %v213 = vld [vmem:[%s0 + $0x38] sm:$0x3]
    %v214 = vxor.u32 %v210, 2147483648
    %v215 = vxor.u32 %v211, 2147483648
    %v216 = vxor.u32 %v212, 2147483648
    %v217 = vxor.u32 %v213, 2147483648
    %v218 = vmul.f32 %v214, 1.442695
    %v219 = vpow.pop %v218
    %v220 = vmul.f32 %v215, 1.442695
    %v221 = vpow.pop %v220
    %v222 = vmul.f32 %v216, 1.442695
    %v223 = vpow.pop %v222
    %v224 = vmul.f32 %v217, 1.442695
    %v225 = vpow.pop %v224
    %v226 = vadd.f32 %v219, 1.0
    %v227 = vadd.f32 %v221, 1.0
    %v228 = vadd.f32 %v223, 1.0
    %v229 = vadd.f32 %v225, 1.0
    %v230 = vrcp.pop %v226
    %v231 = vmul.f32 1.0, %v230
    %v232 = vrcp.pop %v227
    %v233 = vmul.f32 1.0, %v232
    %v234 = vrcp.pop %v228
    %v235 = vmul.f32 1.0, %v234
    %v236 = vrcp.pop %v229
    %v237 = vmul.f32 1.0, %v236
    %v238 = vld [vmem:[%s1 + $0x8] sm:$0x3]
    %v239 = vld [vmem:[%s1 + $0x18] sm:$0x3]
    %v240 = vld [vmem:[%s1 + $0x28] sm:$0x3]
    %v241 = vld [vmem:[%s1 + $0x38] sm:$0x3]
    %v242 = vmul.f32 %v231, %v238
    %v243 = vmul.f32 %v233, %v239
    %v244 = vmul.f32 %v235, %v240
    %v245 = vmul.f32 %v237, %v241
    %v246 = vadd.f32 %v198, %v242
    %v247 = vadd.f32 %v199, %v243
    %v248 = vadd.f32 %v200, %v244
    %v249 = vadd.f32 %v201, %v245
    %v250 = vadd.f32 %v202, %v231
    %v251 = vadd.f32 %v203, %v233
    %v252 = vadd.f32 %v204, %v235
    %v253 = vadd.f32 %v205, %v237
    %v254 = vadd.f32 %v206, %v238
    %v255 = vadd.f32 %v207, %v239
    %v256 = vadd.f32 %v208, %v240
    %v257 = vadd.f32 %v209, %v241
    %v258 = vld [vmem:[%s0 + $0xa] sm:$0x3]
    %v259 = vld [vmem:[%s0 + $0x1a] sm:$0x3]
    %v260 = vld [vmem:[%s0 + $0x2a] sm:$0x3]
    %v261 = vld [vmem:[%s0 + $0x3a] sm:$0x3]
    %v262 = vxor.u32 %v258, 2147483648
    %v263 = vxor.u32 %v259, 2147483648
    %v264 = vxor.u32 %v260, 2147483648
    %v265 = vxor.u32 %v261, 2147483648
    %v266 = vmul.f32 %v262, 1.442695
    %v267 = vpow.pop %v266
    %v268 = vmul.f32 %v263, 1.442695
    %v269 = vpow.pop %v268
    %v270 = vmul.f32 %v264, 1.442695
    %v271 = vpow.pop %v270
    %v272 = vmul.f32 %v265, 1.442695
    %v273 = vpow.pop %v272
    %v274 = vadd.f32 %v267, 1.0
    %v275 = vadd.f32 %v269, 1.0
    %v276 = vadd.f32 %v271, 1.0
    %v277 = vadd.f32 %v273, 1.0
    %v278 = vrcp.pop %v274
    %v279 = vmul.f32 1.0, %v278
    %v280 = vrcp.pop %v275
    %v281 = vmul.f32 1.0, %v280
    %v282 = vrcp.pop %v276
    %v283 = vmul.f32 1.0, %v282
    %v284 = vrcp.pop %v277
    %v285 = vmul.f32 1.0, %v284
    %v286 = vld [vmem:[%s1 + $0xa] sm:$0x3]
    %v287 = vld [vmem:[%s1 + $0x1a] sm:$0x3]
    %v288 = vld [vmem:[%s1 + $0x2a] sm:$0x3]
    %v289 = vld [vmem:[%s1 + $0x3a] sm:$0x3]
    %v290 = vmul.f32 %v279, %v286
    %v291 = vmul.f32 %v281, %v287
    %v292 = vmul.f32 %v283, %v288
    %v293 = vmul.f32 %v285, %v289
    %v294 = vadd.f32 %v246, %v290
    %v295 = vadd.f32 %v247, %v291
    %v296 = vadd.f32 %v248, %v292
    %v297 = vadd.f32 %v249, %v293
    %v298 = vadd.f32 %v250, %v279
    %v299 = vadd.f32 %v251, %v281
    %v300 = vadd.f32 %v252, %v283
    %v301 = vadd.f32 %v253, %v285
    %v302 = vadd.f32 %v254, %v286
    %v303 = vadd.f32 %v255, %v287
    %v304 = vadd.f32 %v256, %v288
    %v305 = vadd.f32 %v257, %v289
    %v306 = vld [vmem:[%s0 + $0xc] sm:$0x3]
    %v307 = vld [vmem:[%s0 + $0x1c] sm:$0x3]
    %v308 = vld [vmem:[%s0 + $0x2c] sm:$0x3]
    %v309 = vld [vmem:[%s0 + $0x3c] sm:$0x3]
    %v310 = vxor.u32 %v306, 2147483648
    %v311 = vxor.u32 %v307, 2147483648
    %v312 = vxor.u32 %v308, 2147483648
    %v313 = vxor.u32 %v309, 2147483648
    %v314 = vmul.f32 %v310, 1.442695
    %v315 = vpow.pop %v314
    %v316 = vmul.f32 %v311, 1.442695
    %v317 = vpow.pop %v316
    %v318 = vmul.f32 %v312, 1.442695
    %v319 = vpow.pop %v318
    %v320 = vmul.f32 %v313, 1.442695
    %v321 = vpow.pop %v320
    %v322 = vadd.f32 %v315, 1.0
    %v323 = vadd.f32 %v317, 1.0
    %v324 = vadd.f32 %v319, 1.0
    %v325 = vadd.f32 %v321, 1.0
    %v326 = vrcp.pop %v322
    %v327 = vmul.f32 1.0, %v326
    %v328 = vrcp.pop %v323
    %v329 = vmul.f32 1.0, %v328
    %v330 = vrcp.pop %v324
    %v331 = vmul.f32 1.0, %v330
    %v332 = vrcp.pop %v325
    %v333 = vmul.f32 1.0, %v332
    %v334 = vld [vmem:[%s1 + $0xc] sm:$0x3]
    %v335 = vld [vmem:[%s1 + $0x1c] sm:$0x3]
    %v336 = vld [vmem:[%s1 + $0x2c] sm:$0x3]
    %v337 = vld [vmem:[%s1 + $0x3c] sm:$0x3]
    %v338 = vmul.f32 %v327, %v334
    %v339 = vmul.f32 %v329, %v335
    %v340 = vmul.f32 %v331, %v336
    %v341 = vmul.f32 %v333, %v337
    %v342 = vadd.f32 %v294, %v338
    %v343 = vadd.f32 %v295, %v339
    %v344 = vadd.f32 %v296, %v340
    %v345 = vadd.f32 %v297, %v341
    %v346 = vadd.f32 %v298, %v327
    %v347 = vadd.f32 %v299, %v329
    %v348 = vadd.f32 %v300, %v331
    %v349 = vadd.f32 %v301, %v333
    %v350 = vadd.f32 %v302, %v334
    %v351 = vadd.f32 %v303, %v335
    %v352 = vadd.f32 %v304, %v336
    %v353 = vadd.f32 %v305, %v337
    %v354 = vld [vmem:[%s0 + $0xe] sm:$0x3]
    %v355 = vld [vmem:[%s0 + $0x1e] sm:$0x3]
    %v356 = vld [vmem:[%s0 + $0x2e] sm:$0x3]
    %v357 = vld [vmem:[%s0 + $0x3e] sm:$0x3]
    %v358 = vxor.u32 %v354, 2147483648
    %v359 = vxor.u32 %v355, 2147483648
    %v360 = vxor.u32 %v356, 2147483648
    %v361 = vxor.u32 %v357, 2147483648
    %v362 = vmul.f32 %v358, 1.442695
    %v363 = vpow.pop %v362
    %v364 = vmul.f32 %v359, 1.442695
    %v365 = vpow.pop %v364
    %v366 = vmul.f32 %v360, 1.442695
    %v367 = vpow.pop %v366
    %v368 = vmul.f32 %v361, 1.442695
    %v369 = vpow.pop %v368
    %v370 = vadd.f32 %v363, 1.0
    %v371 = vadd.f32 %v365, 1.0
    %v372 = vadd.f32 %v367, 1.0
    %v373 = vadd.f32 %v369, 1.0
    %v374 = vrcp.pop %v370
    %v375 = vmul.f32 1.0, %v374
    %v376 = vrcp.pop %v371
    %v377 = vmul.f32 1.0, %v376
    %v378 = vrcp.pop %v372
    %v379 = vmul.f32 1.0, %v378
    %v380 = vrcp.pop %v373
    %v381 = vmul.f32 1.0, %v380
    %v382 = vld [vmem:[%s1 + $0xe] sm:$0x3]
    %v383 = vld [vmem:[%s1 + $0x1e] sm:$0x3]
    %v384 = vld [vmem:[%s1 + $0x2e] sm:$0x3]
    %v385 = vld [vmem:[%s1 + $0x3e] sm:$0x3]
    %v386 = vmul.f32 %v375, %v382
    %v387 = vmul.f32 %v377, %v383
    %v388 = vmul.f32 %v379, %v384
    %v389 = vmul.f32 %v381, %v385
    %v390 = vadd.f32 %v342, %v386
    %v391 = vadd.f32 %v343, %v387
    %v392 = vadd.f32 %v344, %v388
    %v393 = vadd.f32 %v345, %v389
    %v394 = vadd.f32 %v346, %v375
    %v395 = vadd.f32 %v347, %v377
    %v396 = vadd.f32 %v348, %v379
    %v397 = vadd.f32 %v349, %v381
    %v398 = vadd.f32 %v350, %v382
    %v399 = vadd.f32 %v351, %v383
    %v400 = vadd.f32 %v352, %v384
    %v401 = vadd.f32 %v353, %v385
    %v402 = vld [vmem:[#allocation2] sm:$0xff]
    %v407 = vcombine.low %v390, %v391
    %v408 = vcombine.low %v392, %v393
    %v410 = vunpack.c.l.s4 1983009808
    %v411 = vunpack.c.0.s8 %v410
    %v412 = vlaneseq
    %v413 = vshrl.u32 %v412, 7
    %v414 = vsub.s32 %v411, %v413
    %v415 = vrot.slane %v407, %v414
    %v417 = vunpack.c.l.s4 1983009808
    %v418 = vunpack.c.0.s8 %v417
    %v419 = vlaneseq
    %v420 = vshrl.u32 %v419, 7
    %v421 = vsub.s32 %v418, %v420
    %v422 = vrot.slane %v408, %v421
    %v423 = vcombine.low %v415, %v422
    %v425 = vadd.f32 %v402, %v423
    %426 = vst [vmem:[#allocation2] sm:$0xff] %v425
    %v427 = vld [vmem:[#allocation3] sm:$0xff]
    %v432 = vcombine.low %v394, %v395
    %v433 = vcombine.low %v396, %v397
    %v435 = vunpack.c.l.s4 1983009808
    %v436 = vunpack.c.0.s8 %v435
    %v437 = vlaneseq
    %v438 = vshrl.u32 %v437, 7
    %v439 = vsub.s32 %v436, %v438
    %v440 = vrot.slane %v432, %v439
    %v442 = vunpack.c.l.s4 1983009808
    %v443 = vunpack.c.0.s8 %v442
    %v444 = vlaneseq
    %v445 = vshrl.u32 %v444, 7
    %v446 = vsub.s32 %v443, %v445
    %v447 = vrot.slane %v433, %v446
    %v448 = vcombine.low %v440, %v447
    %v450 = vadd.f32 %v427, %v448
    %451 = vst [vmem:[#allocation3] sm:$0xff] %v450
    %v452 = vld [vmem:[#allocation4] sm:$0xff]
    %v457 = vcombine.low %v398, %v399
    %v458 = vcombine.low %v400, %v401
    %v460 = vunpack.c.l.s4 1983009808
    %v461 = vunpack.c.0.s8 %v460
    %v462 = vlaneseq
    %v463 = vshrl.u32 %v462, 7
    %v464 = vsub.s32 %v461, %v463
    %v465 = vrot.slane %v457, %v464
    %v467 = vunpack.c.l.s4 1983009808
    %v468 = vunpack.c.0.s8 %v467
    %v469 = vlaneseq
    %v470 = vshrl.u32 %v469, 7
    %v471 = vsub.s32 %v468, %v470
    %v472 = vrot.slane %v458, %v471
    %v473 = vcombine.low %v465, %v472
    %v475 = vadd.f32 %v452, %v473
    %476 = vst [vmem:[#allocation4] sm:$0xff] %v475
    // Predicated region
    $region14: #{dice_loss_pallas.1} parent=1 // pred_check
      %p477 = pneg %p11
    $region15: #{dice_loss_pallas.1} parent=1 // pred_check_branch
      %479 = sbr.rel (%p477) target = $region17
    $region16: #{dice_loss_pallas.1} parent=1 // pred_region
      %v480 = vld [vmem:[#allocation2] sm:$0xff]
      %481 = vadd.xlane.f32.xlu0 %v480
      %v482 = vpop.xlane.xlu0 %481
      %v483 = vld [vmem:[#allocation3] sm:$0xff]
      %484 = vadd.xlane.f32.xlu0 %v483
      %v485 = vpop.xlane.xlu0 %484
      %v486 = vld [vmem:[#allocation4] sm:$0xff]
      %487 = vadd.xlane.f32.xlu0 %v486
      %v488 = vpop.xlane.xlu0 %487
      %v489 = vadd.f32 %v482, 1.0
      %v490 = vmul.f32 %v489, 2.0
      %v491 = vadd.f32 %v485, %v488
      %v492 = vadd.f32 %v491, 1.0
      %v493 = vrcp.pop %v492
      %v494 = vmul.f32 %v490, %v493
      %495 = vst [vmem:[#allocation5] sm:$0xff] %v494
    $region17: #{dice_loss_pallas.1} parent=1 // pred_fallthru
      _
    // Predicated region
    $region18: #{dice_loss_pallas.1} parent=1 // pred_check
      _
    $region19: #{dice_loss_pallas.1} parent=1 // pred_check_branch
      %497 = sbr.rel (0) target = $region21
    $region20: #{dice_loss_pallas.1} parent=1 // pred_region
      // Predicated region
      $region22: #{dice_loss_pallas.1} parent=20 // pred_check
        _
      $region23: #{dice_loss_pallas.1} parent=20 // pred_check_branch
        %499 = sbr.rel (0) target = $region25
      $region24: #{dice_loss_pallas.1} parent=20 // pred_region
        // Predicated region
        $region26: #{dice_loss_pallas.1} parent=24 // pred_check
          _
        $region27: #{dice_loss_pallas.1} parent=24 // pred_check_branch
          %501 = sbr.rel target = $region29
        $region28: #{dice_loss_pallas.1} parent=24 // pred_region
          // Predicated region
          $region41: #{dice_loss_pallas.1} parent=28 // pred_check
            _
          $region42: #{dice_loss_pallas.1} parent=28 // pred_check_branch
            %516 = sbr.rel (0) target = $region44
          $region43: #{dice_loss_pallas.1} parent=28 // pred_region
            loop: start=0, step=1, limit=1
            $region45: #{dice_loss_pallas.1} parent=43 // loop_pre_header
              _
            $region46: #{dice_loss_pallas.1} parent=43 // loop_header
              %s519 = sphi 0, %s523
              %p520 = scmp.ge.s32.totalorder %s519, 1
              %s524 = sphi [#allocation5], [#allocation5]
              %s525 = sphi %s2, %s2
            $region47: #{dice_loss_pallas.1} parent=43 // loop_header_branch
              %522 = sbr.rel (%p520) target = $region51
            $region48: #{dice_loss_pallas.1} parent=43 // loop_body
              %v526 = vld [vmem:[%s524] sm:$0x3]
              %527 = vst [vmem:[%s525] sm:$0x3] %v526
            $region49: #{dice_loss_pallas.1} parent=43 // loop_footer
              %s523 = sadd.s32 1, %s519
            $region50: #{dice_loss_pallas.1} parent=43 // loop_footer_branch
              %518 = sbr.rel target = $region46
            $region51: #{dice_loss_pallas.1} parent=43 // loop_exit
              _
          $region44: #{dice_loss_pallas.1} parent=28 // pred_fallthru
            _
        $region29: #{dice_loss_pallas.1} parent=24 // pred_fallthru
          _
        // Predicated region
        $region30: #{dice_loss_pallas.1} parent=24 // pred_check
          _
        $region31: #{dice_loss_pallas.1} parent=24 // pred_check_branch
          %503 = sbr.rel (0) target = $region33
        $region32: #{dice_loss_pallas.1} parent=24 // pred_region
          loop: start=0, step=1, limit=1
          $region34: #{dice_loss_pallas.1} parent=32 // loop_pre_header
            _
          $region35: #{dice_loss_pallas.1} parent=32 // loop_header
            %s506 = sphi 0, %s510
            %p507 = scmp.ge.s32.totalorder %s506, 1
            %s511 = sphi [#allocation5], [#allocation5]
            %s512 = sphi %s2, %s2
          $region36: #{dice_loss_pallas.1} parent=32 // loop_header_branch
            %509 = sbr.rel (%p507) target = $region40
          $region37: #{dice_loss_pallas.1} parent=32 // loop_body
            %v513 = vld [vmem:[%s511] sm:$0x3]
            %514 = vst [vmem:[%s512] sm:$0x3] %v513
          $region38: #{dice_loss_pallas.1} parent=32 // loop_footer
            %s510 = sadd.s32 1, %s506
          $region39: #{dice_loss_pallas.1} parent=32 // loop_footer_branch
            %505 = sbr.rel target = $region35
          $region40: #{dice_loss_pallas.1} parent=32 // loop_exit
            _
        $region33: #{dice_loss_pallas.1} parent=24 // pred_fallthru
          _
      $region25: #{dice_loss_pallas.1} parent=20 // pred_fallthru
        _
      %528 = vnop
    $region21: #{dice_loss_pallas.1} parent=1 // pred_fallthru
      _
    // Predicated region
    $region52: #{dice_loss_pallas.1} parent=1 // pred_check
      _
    $region53: #{dice_loss_pallas.1} parent=1 // pred_check_branch
      %530 = sbr.rel (0) target = $region55
    $region54: #{dice_loss_pallas.1} parent=1 // pred_region
      _
    $region55: #{dice_loss_pallas.1} parent=1 // pred_fallthru
      _

</llo_original>
